<compile_context>
chip_gen: v7x
topology: tpu7x:2x2x1
jax: 0.10.0
libtpu: 0.0.40
codegen_flags: <defaults>
</compile_context>

<pallas_src>
import jax
import jax.numpy as jnp
from jax.experimental import pallas as pl
from jax.experimental.pallas import tpu as pltpu


def _round_up(x, m):
    return ((x + m - 1) // m) * m


def _cdiv(a, b):
    return (a + b - 1) // b


def _choose_patch_tile(n, batch, min_steps=8):
    """Pick the patch-row tile TN (multiple of 16) and number of N tiles.

    Prefers MXU-friendly 256-row tiles but shrinks to 128/64 when the grid
    would otherwise have too few steps for pipelining / v7x megacore sharding,
    then rebalances TN to minimise zero-row padding."""
    tn = 256
    for cand in (256, 128, 64):
        tn = cand
        if batch * _cdiv(n, cand) >= min_steps:
            break
    tn = min(tn, _round_up(n, 16))
    n_tiles = _cdiv(n, tn)
    tn = _round_up(_cdiv(n, n_tiles), 16)
    return tn, n_tiles


def _make_embed_kernel(tn):
    def kernel(patches_ref, w_ref, pos_ref, out_ref):
        # patches_ref: (1, TN, Kp) bf16 -- one (batch, patch-tile) block
        # w_ref:       (Kp, Dp)    bf16 -- conv weight as a matrix (grid-resident)
        # pos_ref:     (Np, Dp)    f32  -- full pos table + folded conv bias
        #                                  (grid-resident, DMA'd once)
        # out_ref:     (1, TN, Dp) out_dtype
        row0 = pl.multiple_of(pl.program_id(1) * tn, tn)
        x = patches_ref[0]                                                # (TN, Kp)
        y = jnp.dot(x, w_ref[...], preferred_element_type=jnp.float32)   # MXU, f32 acc
        y = y + pos_ref[pl.ds(row0, tn), :]                               # f32 epilogue
        out_ref[0] = y.astype(out_ref.dtype)
    return kernel


def siglip_vision_embeddings(pixel_values, conv_w, conv_b, pos_emb, patch_size,
                             out_dtype=jnp.bfloat16):
    """pixel_values: (B, C, H, W) NCHW like PyTorch.
    conv_w: (D, C, P, P), conv_b: (D,), pos_emb: (N, D). Returns (B, N, D).

    Note: MXU operands are bf16, so the result matches the f32 PyTorch conv to
    ~1e-2 absolute at unit-scale inputs; out_dtype=bf16 by default since the
    extra f32 output bytes buy no real precision."""
    B, C, H, W = pixel_values.shape
    D = conv_w.shape[0]
    P = patch_size
    if H % P or W % P:
        raise ValueError("image size must be divisible by patch_size")
    Hp, Wp = H // P, W // P
    N = Hp * Wp
    K = C * P * P

    # ---- layout glue (no compute): im2col + bf16 operands for the MXU ----
    # (B,C,Hp,P,Wp,P) -> (B,Hp,Wp,C,P,P) -> (B,N,K); (c, kh, kw) flatten order
    # matches conv_w.reshape(D, K). Materialised in HBM by XLA so the kernel's
    # per-tile input DMAs are contiguous and lane-dense.
    patches = pixel_values.reshape(B, C, Hp, P, Wp, P)
    patches = jnp.transpose(patches, (0, 2, 4, 1, 3, 5)).reshape(B, N, K)
    patches = patches.astype(jnp.bfloat16)

    w_mat = conv_w.reshape(D, K).T.astype(jnp.bfloat16)            # (K, D)
    pos_plus_b = (pos_emb + conv_b[None, :]).astype(jnp.float32)   # bias folded in, f32

    # ---- tiling / padding for lane & sublane alignment ----
    TN, n_tiles = _choose_patch_tile(N, B)
    Np = TN * n_tiles
    Kp = _round_up(K, 128)
    Dp = _round_up(D, 128)
    if Kp != K or Np != N:
        patches = jnp.pad(patches, ((0, 0), (0, Np - N), (0, Kp - K)))
    if Kp != K or Dp != D:
        w_mat = jnp.pad(w_mat, ((0, Kp - K), (0, Dp - D)))
    if Np != N or Dp != D:
        pos_plus_b = jnp.pad(pos_plus_b, ((0, Np - N), (0, Dp - D)))

    # ---- explicit VMEM budget (double-buffered streams + resident blocks) ----
    out_itemsize = jnp.dtype(out_dtype).itemsize
    vmem_limit = (
        2 * TN * Kp * 2            # patches stream (bf16, double-buffered)
        + 2 * Kp * Dp * 2          # resident weight (budget 2 buffers)
        + 2 * Np * Dp * 4          # resident pos table (budget 2 buffers)
        + 2 * TN * Dp * out_itemsize   # output stream
        + (4 << 20)                # headroom
    )
    vmem_limit = min(max(vmem_limit, 16 << 20), 96 << 20)

    # Output is (B, N, Dp): the final partial patch tile (when TN does not
    # divide N) is written with Pallas' masked boundary store, so there is no
    # post-kernel N-depad copy.
    out = pl.pallas_call(
        _make_embed_kernel(TN),
        out_shape=jax.ShapeDtypeStruct((B, N, Dp), out_dtype),
        grid_spec=pltpu.PrefetchScalarGridSpec(
            num_scalar_prefetch=0,
            grid=(B, n_tiles),
            in_specs=[
                pl.BlockSpec((1, TN, Kp), lambda b, n: (b, n, 0)),
                pl.BlockSpec((Kp, Dp), lambda b, n: (0, 0)),   # grid-resident
                pl.BlockSpec((Np, Dp), lambda b, n: (0, 0)),   # grid-resident full table
            ],
            out_specs=pl.BlockSpec((1, TN, Dp), lambda b, n: (b, n, 0)),
        ),
        compiler_params=pltpu.CompilerParams(
            dimension_semantics=("parallel", "parallel"),
            vmem_limit_bytes=int(vmem_limit),
        ),
    )(patches, w_mat, pos_plus_b)

    if Dp == D:
        return out          # real SigLIP hidden sizes (768/1024/1152) land here
    return out[:, :, :D]    # toy / non-128-multiple hidden sizes only


def _reference(pixel_values, conv_w, conv_b, pos_emb, patch_size):
    """Pure-JAX f32 reference mirroring the PyTorch forward."""
    y = jax.lax.conv_general_dilated(
        pixel_values, conv_w,
        window_strides=(patch_size, patch_size),
        padding="VALID",
        dimension_numbers=("NCHW", "OIHW", "NCHW"),
    ) + conv_b[None, :, None, None]
    B, D, Hp, Wp = y.shape
    y = y.reshape(B, D, Hp * Wp).transpose(0, 2, 1)     # flatten(2).transpose(1,2)
    return y + pos_emb[None, :, :]                       # position_ids = arange(N)


def _run_case(key, B, C, IMG, P, D):
    N = (IMG // P) ** 2
    k_x, k_w, k_b, k_pos = jax.random.split(key, 4)
    pixel_values = jax.random.normal(k_x, (B, C, IMG, IMG), dtype=jnp.float32)
    conv_w = jax.random.normal(k_w, (D, C, P, P), dtype=jnp.float32) * 0.02
    conv_b = jax.random.normal(k_b, (D,), dtype=jnp.float32) * 0.02
    pos_emb = jax.random.normal(k_pos, (N, D), dtype=jnp.float32) * 0.02

    out = siglip_vision_embeddings(pixel_values, conv_w, conv_b, pos_emb, P)
    out = jax.block_until_ready(out)

    ref = _reference(pixel_values, conv_w, conv_b, pos_emb, P)
    assert out.shape == (B, N, D), (out.shape, (B, N, D))
    err = float(jnp.max(jnp.abs(out.astype(jnp.float32) - ref)))
    # bf16 MXU operands / bf16 output -> loosened tolerance vs f32 ref.
    assert err < 3e-2, err


if __name__ == "__main__":
    key = jax.random.PRNGKey(0)
    k0, k1 = jax.random.split(key)

    # Small, module-consistent config: hidden=32, channels=4, image=16, patch=4.
    _run_case(k0, B=2, C=4, IMG=16, P=4, D=32)   # N = 16 (even tiles)
    # Uneven-N config to exercise the masked partial final tile (N = 25).
    _run_case(k1, B=2, C=4, IMG=20, P=4, D=32)

    print("KERNEL_OK")
</pallas_src>

<mosaic_0001>
module attributes {stable_mosaic.version = 11 : i64} {
  func.func @kernel(%arg0: i32, %arg1: i32, %arg2: memref<1x16x128xbf16, #tpu.memory_space<vmem>>, %arg3: memref<128x128xbf16, #tpu.memory_space<vmem>>, %arg4: memref<16x128xf32, #tpu.memory_space<vmem>>, %arg5: memref<1x16x128xbf16, #tpu.memory_space<vmem>>) attributes {dimension_semantics = [#tpu.dimension_semantics<parallel>, #tpu.dimension_semantics<parallel>], iteration_bounds = array<i64: 2, 1>, scalar_prefetch = 0 : i64, scratch_operands = 0 : i64, tpu.core_type = #tpu.core_type<tc>, window_params = [{transform_indices = @transform_0, window_bounds = array<i64: 1, 16, 128>}, {pipeline_mode = #tpu.pipeline_mode<synchronous>, transform_indices = @transform_1, window_bounds = array<i64: 128, 128>}, {pipeline_mode = #tpu.pipeline_mode<synchronous>, transform_indices = @transform_2, window_bounds = array<i64: 16, 128>}, {transform_indices = @transform_3, window_bounds = array<i64: 1, 16, 128>}]} {
    %c16_i32 = arith.constant 16 : i32
    %0 = arith.muli %arg1, %c16_i32 : i32
    %1 = tpu.assume_multiple %0, 16 : i32
    %c0 = arith.constant 0 : index
    %c0_0 = arith.constant 0 : index
    %c0_1 = arith.constant 0 : index
    %2 = vector.load %arg2[%c0, %c0_0, %c0_1] : memref<1x16x128xbf16, #tpu.memory_space<vmem>>, vector<1x16x128xbf16>
    %3 = vector.shape_cast %2 : vector<1x16x128xbf16> to vector<16x128xbf16>
    %c0_2 = arith.constant 0 : index
    %c0_3 = arith.constant 0 : index
    %4 = vector.load %arg3[%c0_2, %c0_3] : memref<128x128xbf16, #tpu.memory_space<vmem>>, vector<128x128xbf16>
    %cst = arith.constant dense<0.000000e+00> : vector<16x128xf32>
    %5 = tpu.matmul %3, %4, %cst {dimension_numbers = #tpu.dot_dimension_numbers<[1], [0], [0], [1], [0, 0, 1, 1], [], []>} : vector<16x128xbf16>, vector<128x128xbf16>, vector<16x128xf32> -> vector<16x128xf32>
    %6 = arith.index_cast %1 : i32 to index
    %c0_4 = arith.constant 0 : index
    %7 = vector.load %arg4[%6, %c0_4] : memref<16x128xf32, #tpu.memory_space<vmem>>, vector<16x128xf32>
    %8 = arith.addf %5, %7 : vector<16x128xf32>
    %9 = arith.truncf %8 : vector<16x128xf32> to vector<16x128xbf16>
    %c0_5 = arith.constant 0 : index
    %c0_6 = arith.constant 0 : index
    %c0_7 = arith.constant 0 : index
    %10 = vector.load %arg5[%c0_5, %c0_6, %c0_7] : memref<1x16x128xbf16, #tpu.memory_space<vmem>>, vector<1x16x128xbf16>
    %11 = vector.shape_cast %10 : vector<1x16x128xbf16> to vector<16x128xbf16>
    %12 = vector.shape_cast %9 : vector<16x128xbf16> to vector<1x16x128xbf16>
    tpu.vector_store %arg5[%c0_5, %c0_6, %c0_7], %12 {strides = array<i32>} : memref<1x16x128xbf16, #tpu.memory_space<vmem>>, vector<1x16x128xbf16>,
    return
  }
  func.func @transform_0(%arg0: i32, %arg1: i32) -> (i32, i32, i32) {
    %c0_i32 = arith.constant 0 : i32
    %c0_i32_0 = arith.constant 0 : i32
    return %arg0, %arg1, %c0_i32 : i32, i32, i32
  }
  func.func @transform_1(%arg0: i32, %arg1: i32) -> (i32, i32) {
    %c0_i32 = arith.constant 0 : i32
    %c0_i32_0 = arith.constant 0 : i32
    %c0_i32_1 = arith.constant 0 : i32
    return %c0_i32, %c0_i32_0 : i32, i32
  }
  func.func @transform_2(%arg0: i32, %arg1: i32) -> (i32, i32) {
    %c0_i32 = arith.constant 0 : i32
    %c0_i32_0 = arith.constant 0 : i32
    %c0_i32_1 = arith.constant 0 : i32
    return %c0_i32, %c0_i32_0 : i32, i32
  }
  func.func @transform_3(%arg0: i32, %arg1: i32) -> (i32, i32, i32) {
    %c0_i32 = arith.constant 0 : i32
    %c0_i32_0 = arith.constant 0 : i32
    return %arg0, %arg1, %c0_i32 : i32, i32, i32
  }
}

</mosaic_0001>

<llo_original>
// kernel: tpu_custom_call.1
$region0: #{tpu_custom_call.1}
  #allocation0 [shape = 'u32[]', space=smem, size = 0x4, offset = 0x4, fixed_abs, tag = 'smem constant byte address 0x4 - core index']
  #allocation1 [shape = 'u32[144,128]{1,0:T(1,128)}', space=vmem, size = 0x12000, scoped, tag = 'internal scratch']
  %s0 = inlined_call_operand.hbm [shape: bf16[2,16,128], index: 0, kind: input, shape index: {}]
  %s1 = inlined_call_operand.hbm [shape: bf16[128,128], index: 1, kind: input, shape index: {}]
  %s2 = inlined_call_operand.hbm [shape: f32[16,128], index: 2, kind: input, shape index: {}]
  %s3 = inlined_call_operand.hbm [shape: bf16[2,16,128], index: 3, kind: output, shape index: {}]
  %s4 = sld [smem:[#allocation0]]
  $region57: #{tpu_custom_call.1} parent=0
    _
  %s6 = ssub.s32 1, %s4
  %s7 = scalar_select 0, %s6, %s4
  $region1: #{tpu_custom_call.1} parent=0
    #allocation2 [shape = 'u8[8192]{0}', space=vmem, size = 0x2000, scoped, tag = 'input window, operand 0']
    #allocation3 [shape = 's32[2]{0}', space=sflag, size = 0x8, scoped, tag = 'scoped memory for tpu_custom_call.1']
    #allocation4 [shape = 's32[2]{0}', space=sflag, size = 0x8, scoped, tag = 'scoped memory for tpu_custom_call.1']
    #allocation5 [shape = 'u8[32768]{0}', space=vmem, size = 0x8000, scoped, tag = 'input window, operand 1, single buffered']
    #allocation6 [shape = 's32[1]{0}', space=sflag, size = 0x4, scoped, tag = 'scoped memory for tpu_custom_call.1']
    #allocation7 [shape = 'u8[8192]{0}', space=vmem, size = 0x2000, scoped, tag = 'input window, operand 2, single buffered']
    #allocation8 [shape = 'u8[8192]{0}', space=vmem, size = 0x2000, scoped, tag = 'output window, operand 0']
    %8 = vsyncpa [#allocation3], 0
    %s9 = scalar_lea.sflag [#allocation3], 1
    %10 = vsyncpa %s9, 0
    %11 = vsyncpa [#allocation6], 0
    %12 = vsyncpa [#allocation4], 0
    %s13 = scalar_lea.sflag [#allocation4], 1
    %14 = vsyncpa %s13, 0
    loop: start=0, step=1, limit=4
    $region2: #{tpu_custom_call.1} parent=1 // loop_pre_header
      _
    $region3: #{tpu_custom_call.1} parent=1 // loop_header
      %s16 = sphi 0, %s20
      %p17 = scmp.ge.s32.totalorder %s16, 4
      %s23 = sphi 0, %s35
      %s24 = sphi 0, %s31
      %s25 = sphi 0, %s23
      %s26 = sphi 0, %s24
      %s27 = sphi 0, %s25
      %s28 = sphi 0, %s26
      %s40 = sphi 0, %s42
      %s43 = sphi 0, %s40
      %s44 = sphi 0, %s43
      %s60 = sphi 0, %s44
      %s64 = sphi 0, %s64
      %s66 = sphi 0, %s64
      %s67 = sphi 0, %s66
      %s81 = sphi 0, %s67
      %s85 = sphi 0, %s85
      %s87 = sphi 0, %s85
      %s88 = sphi 0, %s87
      %s102 = sphi 0, %s88
      %s110 = sphi 0, %s112
      %s113 = sphi 0, %s110
      %s114 = sphi 0, %s113
      %s130 = sphi 0, %s114
    $region4: #{tpu_custom_call.1} parent=1 // loop_header_branch
      %19 = sbr.rel (%p17) target = $region8
    $region5: #{tpu_custom_call.1} parent=1 // loop_body
      %s21 = ssub.s32 %s16, 1
      %s22 = ssub.s32 %s16, 2
      %s29 = sadd.s32 1, %s24
      %p30 = scmp.ge.s32.totalorder %s29, 1
      %s31 = scalar_select %p30, 0, %s29
      %s32 = sadd.s32 1, %s23
      %s33 = scalar_select %p30, %s32, %s23
      %p34 = scmp.ge.s32.totalorder %s33, 2
      %s35 = scalar_select %p34, 0, %s33
      %s36 = ssub.s32 %s23, %s35
      %s37 = ssub.s32 %s24, %s31
      %s38 = sor.u32 %s36, %s37
      %p39 = scmp.eq.s32.totalorder %s38, 0
      %s41 = sadd.s32 %s40, 1
      %s42 = scalar_select %p39, %s40, %s41
      %p45 = pneg %p39
      %p46 = scmp.eq.s32.totalorder %s16, 1
      %p47 = por %p45, %p46
      %p48 = scmp.ne.s32.totalorder %s40, %s43
      %p49 = scmp.eq.s32.totalorder %s16, 0
      %p50 = por %p48, %p49
      %p51 = scmp.ne.s32.totalorder %s40, %s43
      %p52 = scmp.eq.s32.totalorder %s21, 1
      %p53 = por %p51, %p52
      %p54 = scmp.ne.s32.totalorder %s43, %s44
      %p55 = scmp.eq.s32.totalorder %s21, 0
      %p56 = por %p54, %p55
      %p57 = scmp.ne.s32.totalorder %s43, %s44
      %p58 = scmp.eq.s32.totalorder %s22, 1
      %p59 = por %p57, %p58
      %p61 = scmp.ne.s32.totalorder %s44, %s60
      %p62 = scmp.eq.s32.totalorder %s22, 0
      %p63 = por %p61, %p62
      %s65 = sadd.s32 %s64, 1
      %p68 = scmp.eq.s32.totalorder %s16, 1
      %p69 = scmp.ne.s32.totalorder %s64, %s66
      %p70 = scmp.eq.s32.totalorder %s16, 0
      %p71 = por %p69, %p70
      %p72 = scmp.ne.s32.totalorder %s64, %s66
      %p73 = scmp.eq.s32.totalorder %s21, 1
      %p74 = por %p72, %p73
      %p75 = scmp.ne.s32.totalorder %s66, %s67
      %p76 = scmp.eq.s32.totalorder %s21, 0
      %p77 = por %p75, %p76
      %p78 = scmp.ne.s32.totalorder %s66, %s67
      %p79 = scmp.eq.s32.totalorder %s22, 1
      %p80 = por %p78, %p79
      %p82 = scmp.ne.s32.totalorder %s67, %s81
      %p83 = scmp.eq.s32.totalorder %s22, 0
      %p84 = por %p82, %p83
      %s86 = sadd.s32 %s85, 1
      %p89 = scmp.eq.s32.totalorder %s16, 1
      %p90 = scmp.ne.s32.totalorder %s85, %s87
      %p91 = scmp.eq.s32.totalorder %s16, 0
      %p92 = por %p90, %p91
      %p93 = scmp.ne.s32.totalorder %s85, %s87
      %p94 = scmp.eq.s32.totalorder %s21, 1
      %p95 = por %p93, %p94
      %p96 = scmp.ne.s32.totalorder %s87, %s88
      %p97 = scmp.eq.s32.totalorder %s21, 0
      %p98 = por %p96, %p97
      %p99 = scmp.ne.s32.totalorder %s87, %s88
      %p100 = scmp.eq.s32.totalorder %s22, 1
      %p101 = por %p99, %p100
      %p103 = scmp.ne.s32.totalorder %s88, %s102
      %p104 = scmp.eq.s32.totalorder %s22, 0
      %p105 = por %p103, %p104
      %s106 = ssub.s32 %s23, %s35
      %s107 = ssub.s32 %s24, %s31
      %s108 = sor.u32 %s106, %s107
      %p109 = scmp.eq.s32.totalorder %s108, 0
      %s111 = sadd.s32 %s110, 1
      %s112 = scalar_select %p109, %s110, %s111
      %p115 = pneg %p109
      %p116 = scmp.eq.s32.totalorder %s16, 1
      %p117 = por %p115, %p116
      %p118 = scmp.ne.s32.totalorder %s110, %s113
      %p119 = scmp.eq.s32.totalorder %s16, 0
      %p120 = por %p118, %p119
      %p121 = scmp.ne.s32.totalorder %s110, %s113
      %p122 = scmp.eq.s32.totalorder %s21, 1
      %p123 = por %p121, %p122
      %p124 = scmp.ne.s32.totalorder %s113, %s114
      %p125 = scmp.eq.s32.totalorder %s21, 0
      %p126 = por %p124, %p125
      %p127 = scmp.ne.s32.totalorder %s113, %s114
      %p128 = scmp.eq.s32.totalorder %s22, 1
      %p129 = por %p127, %p128
      %p131 = scmp.ne.s32.totalorder %s114, %s130
      %p132 = scmp.eq.s32.totalorder %s22, 0
      %p133 = por %p131, %p132
      %p134 = scmp.le.s32.totalorder 1, %s16
      %p135 = scmp.lt.s32.totalorder %s16, 3
      %p136 = pnand %p134, %p135
      %p137 = pneg %p136
      // Predicated region
      $region9: #{tpu_custom_call.1} parent=5 // pred_check
        _
      $region10: #{tpu_custom_call.1} parent=5 // pred_check_branch
        %139 = sbr.rel (%p136) target = $region12
      $region11: #{tpu_custom_call.1} parent=5 // pred_region
        %s140 = ssub.s32 %s16, 1
        // Predicated region
        $region13: #{tpu_custom_call.1} parent=11 // pred_check
          %p141 = pneg %p77
        $region14: #{tpu_custom_call.1} parent=11 // pred_check_branch
          %143 = sbr.rel (%p141) target = $region16
        $region15: #{tpu_custom_call.1} parent=11 // pred_region
          %s145 = ssub.s32 1024, 1024
          %146 = vsyncadd [#allocation6], %s145
          %s147 = sshll.u32 [#allocation5], 4
          %s148 = int_to_ptr.vmem [resolvable:$true] %s147
          %153 = dma.hbm_to_vmem [thread:$0]  %s1, 1024, %s148, [#allocation6], 64, 64, 4
        $region16: #{tpu_custom_call.1} parent=11 // pred_fallthru
          _
        // Predicated region
        $region17: #{tpu_custom_call.1} parent=11 // pred_check
          %p154 = pneg %p98
        $region18: #{tpu_custom_call.1} parent=11 // pred_check_branch
          %156 = sbr.rel (%p154) target = $region20
        $region19: #{tpu_custom_call.1} parent=11 // pred_region
          %s158 = ssub.s32 256, 256
          %159 = vsyncadd [#allocation6], %s158
          %s160 = sshll.u32 [#allocation7], 4
          %s161 = int_to_ptr.vmem [resolvable:$true] %s160
          %166 = dma.hbm_to_vmem [thread:$0]  %s2, 256, %s161, [#allocation6], 128, 128, 8
        $region20: #{tpu_custom_call.1} parent=11 // pred_fallthru
          _
      $region12: #{tpu_custom_call.1} parent=5 // pred_fallthru
        _
      %p167 = scmp.lt.s32.totalorder %s16, 2
      // Predicated region
      $region21: #{tpu_custom_call.1} parent=5 // pred_check
        %p168 = pneg %p167
      $region22: #{tpu_custom_call.1} parent=5 // pred_check_branch
        %170 = sbr.rel (%p168) target = $region24
      $region23: #{tpu_custom_call.1} parent=5 // pred_region
        // Predicated region
        $region25: #{tpu_custom_call.1} parent=23 // pred_check
          %p171 = pneg %p50
        $region26: #{tpu_custom_call.1} parent=23 // pred_check_branch
          %173 = sbr.rel (%p171) target = $region28
        $region27: #{tpu_custom_call.1} parent=23 // pred_region
          %s174 = sand.u32 %s40, 1
          %s175 = scalar_lea.sflag [#allocation3], %s174
          %s176 = sand.u32 %s40, 1
          %s177 = smul.addr %s176, 8
          %s178 = scalar_lea.vmem [#allocation2], %s177
          %s179 = smul.u32 2, %s24
          %s181 = ssub.s32 128, 128
          %182 = vsyncadd %s175, %s181
          %s183 = smul.addr %s23, 2
          %s184 = sadd.s32 %s179, %s183
          %s185 = smul.addr %s184, 64
          %s186 = scalar_lea.hbm %s0, %s185
          %s187 = sshll.u32 %s178, 4
          %s188 = int_to_ptr.vmem [resolvable:$true] %s187
          %193 = dma.hbm_to_vmem [thread:$0]  %s186, 128, %s188, %s175, 64, 64, 4
        $region28: #{tpu_custom_call.1} parent=23 // pred_fallthru
          _
      $region24: #{tpu_custom_call.1} parent=5 // pred_fallthru
        _
      %p194 = scmp.le.s32.totalorder 1, %s16
      %p195 = scmp.lt.s32.totalorder %s16, 3
      %p196 = pnand %p194, %p195
      %p197 = pneg %p196
      // Predicated region
      $region29: #{tpu_custom_call.1} parent=5 // pred_check
        _
      $region30: #{tpu_custom_call.1} parent=5 // pred_check_branch
        %199 = sbr.rel (%p196) target = $region32
      $region31: #{tpu_custom_call.1} parent=5 // pred_region
        %s200 = ssub.s32 %s16, 1
        %s201 = sand.u32 %s43, 1
        %s202 = scalar_lea.sflag [#allocation3], %s201
        %s203 = sand.u32 %s43, 1
        %s204 = smul.addr %s203, 8
        %s205 = scalar_lea.vmem [#allocation2], %s204
        // Predicated region
        $region33: #{tpu_custom_call.1} parent=31 // pred_check
          %p206 = pneg %p56
        $region34: #{tpu_custom_call.1} parent=31 // pred_check_branch
          %208 = sbr.rel (%p206) target = $region36
        $region35: #{tpu_custom_call.1} parent=31 // pred_region
          %209 = dma.done %s202, 128
        $region36: #{tpu_custom_call.1} parent=31 // pred_fallthru
          _
        // Predicated region
        $region37: #{tpu_custom_call.1} parent=31 // pred_check
          %p210 = pneg %p77
        $region38: #{tpu_custom_call.1} parent=31 // pred_check_branch
          %212 = sbr.rel (%p210) target = $region40
        $region39: #{tpu_custom_call.1} parent=31 // pred_region
          %213 = dma.done [#allocation6], 1024
        $region40: #{tpu_custom_call.1} parent=31 // pred_fallthru
          _
        // Predicated region
        $region41: #{tpu_custom_call.1} parent=31 // pred_check
          %p214 = pneg %p98
        $region42: #{tpu_custom_call.1} parent=31 // pred_check_branch
          %216 = sbr.rel (%p214) target = $region44
        $region43: #{tpu_custom_call.1} parent=31 // pred_region
          %217 = dma.done [#allocation6], 256
        $region44: #{tpu_custom_call.1} parent=31 // pred_fallthru
          _
        %s218 = sand.u32 %s43, 1
        %s219 = scalar_lea.sflag [#allocation3], %s218
        %s220 = sand.u32 %s43, 1
        %s221 = smul.addr %s220, 8
        %s222 = scalar_lea.vmem [#allocation2], %s221
        %p223 = pneg %p56
        %p224 = pneg %p53
        %p225 = pneg %p77
        %p226 = pneg %p74
        %p227 = pneg %p98
        %p228 = pneg %p95
        %p229 = pneg %p126
        %p230 = pneg %p123
        %s231 = sand.u32 %s113, 1
        %s232 = scalar_lea.sflag [#allocation4], %s231
        %s233 = sand.u32 %s113, 1
        %s234 = smul.addr %s233, 8
        %s235 = scalar_lea.vmem [#allocation8], %s234
        %s236 = smul.u32 2, %s26
        %s237 = smul.u32 2, %s26
        %s239 = smul.u32 %s26, 16
        %v240 = vld [vmem:[%s205] sm:$0xf]
        %v241 = vld [vmem:[%s205 + $0x4] sm:$0xf]
        %v242 = vld [vmem:[#allocation5] sm:$0xf]
        %v243 = vld [vmem:[#allocation5 + $0x4] sm:$0xf]
        %v244 = vld [vmem:[#allocation5 + $0x8] sm:$0xf]
        %v245 = vld [vmem:[#allocation5 + $0xc] sm:$0xf]
        %v246 = vld [vmem:[#allocation5 + $0x10] sm:$0xf]
        %v247 = vld [vmem:[#allocation5 + $0x14] sm:$0xf]
        %v248 = vld [vmem:[#allocation5 + $0x18] sm:$0xf]
        %v249 = vld [vmem:[#allocation5 + $0x1c] sm:$0xf]
        %v250 = vld [vmem:[#allocation5 + $0x20] sm:$0xf]
        %v251 = vld [vmem:[#allocation5 + $0x24] sm:$0xf]
        %v252 = vld [vmem:[#allocation5 + $0x28] sm:$0xf]
        %v253 = vld [vmem:[#allocation5 + $0x2c] sm:$0xf]
        %v254 = vld [vmem:[#allocation5 + $0x30] sm:$0xf]
        %v255 = vld [vmem:[#allocation5 + $0x34] sm:$0xf]
        %v256 = vld [vmem:[#allocation5 + $0x38] sm:$0xf]
        %v257 = vld [vmem:[#allocation5 + $0x3c] sm:$0xf]
        %s258 = scalar_lea.vmem [#allocation7], %s239
        %v259 = vld [vmem:[%s258] sm:$0xff]
        %v260 = vld [vmem:[%s258 + $0x8] sm:$0xff]
        %v263 = vunpack.c.l.b16 %v240
        %v264 = vunpack.c.l.b16 %v241
        %v265 = vpack.c.b16 %v264, %v263
        %v283 = vunpack.c.l.b16 %v242
        %v284 = vunpack.c.l.b16 %v243
        %v285 = vunpack.c.l.b16 %v244
        %v286 = vunpack.c.l.b16 %v245
        %v287 = vunpack.c.l.b16 %v246
        %v288 = vunpack.c.l.b16 %v247
        %v289 = vunpack.c.l.b16 %v248
        %v290 = vunpack.c.l.b16 %v249
        %v291 = vunpack.c.l.b16 %v250
        %v292 = vunpack.c.l.b16 %v251
        %v293 = vunpack.c.l.b16 %v252
        %v294 = vunpack.c.l.b16 %v253
        %v295 = vunpack.c.l.b16 %v254
        %v296 = vunpack.c.l.b16 %v255
        %v297 = vunpack.c.l.b16 %v256
        %v298 = vunpack.c.l.b16 %v257
        %v299 = vpack.c.b16 %v284, %v283
        %v300 = vpack.c.b16 %v286, %v285
        %v301 = vpack.c.b16 %v288, %v287
        %v302 = vpack.c.b16 %v290, %v289
        %v303 = vpack.c.b16 %v292, %v291
        %v304 = vpack.c.b16 %v294, %v293
        %v305 = vpack.c.b16 %v296, %v295
        %v306 = vpack.c.b16 %v298, %v297
        %315 = vmatprep.subr.bf16.mxu0 0
        %316 = vmatpush1.bf16.msra.mxu0 %v299
        %317 = vmatprep.subr.bf16.mxu0 0
        %318 = vmatpush1.bf16.msra.mxu0 %v300
        %319 = vmatprep.subr.bf16.mxu0 0
        %320 = vmatpush1.bf16.msra.mxu0 %v301
        %321 = vmatprep.subr.bf16.mxu0 0
        %322 = vmatpush1.bf16.msra.mxu0 %v302
        %323 = vmatprep.subr.bf16.mxu0 0
        %324 = vmatpush1.bf16.msra.mxu0 %v303
        %325 = vmatprep.subr.bf16.mxu0 0
        %326 = vmatpush1.bf16.msra.mxu0 %v304
        %327 = vmatprep.subr.bf16.mxu0 0
        %328 = vmatpush1.bf16.msra.mxu0 %v305
        %329 = vmatprep.subr.bf16.mxu0 0
        %330 = vmatpush1.bf16.msra.mxu0 %v306
        %331 = vmatprep.subr.bf16.mxu0 0
        %332 = vmatpush1.bf16.msra.mxu0 0
        %333 = vmatprep.subr.bf16.mxu0 0
        %334 = vmatpush1.bf16.msra.mxu0 0
        %335 = vmatprep.subr.bf16.mxu0 0
        %336 = vmatpush1.bf16.msra.mxu0 0
        %337 = vmatprep.subr.bf16.mxu0 0
        %338 = vmatpush1.bf16.msra.mxu0 0
        %339 = vmatprep.subr.bf16.mxu0 0
        %340 = vmatpush1.bf16.msra.mxu0 0
        %341 = vmatprep.subr.bf16.mxu0 0
        %342 = vmatpush1.bf16.msra.mxu0 0
        %343 = vmatprep.subr.bf16.mxu0 0
        %344 = vmatpush1.bf16.msra.mxu0 0
        %345 = vmatprep.subr.bf16.mxu0 0
        %346 = vmatpush1.bf16.msra.mxu0 0
        %347 = vmatprep.mubr.bf16.mxu0 0
        %348 = vmatmul.mubr.bf16.gmra.mrb[0].mxu0 %v265
        %v349 = vpop.f32.mrb[0].mxu0
        %v350 = vadd.f32 %v259, %v349
        %v351 = vpop.f32.mrb[0].mxu0
        %v352 = vpop.f32.mrb[0].mxu0
        %v353 = vadd.f32 %v260, %v352
        %v354 = vpop.f32.mrb[0].mxu0
        %355 = vdwg.mxu0
        %v356 = vpack.c.bf16 %v353, %v350
        %v358 = vunpack.c.l.b16 %v356
        %v359 = vunpack.c.h.b16 %v356
        %v360 = vpack.c.b16 %v358, %v358
        %v361 = vpack.c.b16 %v359, %v359
        %364 = vst [vmem:[%s235] sm:$0xf] %v360
        %365 = vst [vmem:[%s235 + $0x4] sm:$0xf] %v361
        %s366 = sand.u32 %s113, 1
        %s367 = scalar_lea.sflag [#allocation4], %s366
        %s368 = sand.u32 %s113, 1
        %s369 = smul.addr %s368, 8
        %s370 = scalar_lea.vmem [#allocation8], %s369
        // Predicated region
        $region45: #{tpu_custom_call.1} parent=31 // pred_check
          %p371 = pneg %p123
        $region46: #{tpu_custom_call.1} parent=31 // pred_check_branch
          %373 = sbr.rel (%p371) target = $region48
        $region47: #{tpu_custom_call.1} parent=31 // pred_region
          %s374 = smul.u32 2, %s26
          %s376 = ssub.s32 128, 128
          %377 = vsyncadd %s367, %s376
          %s378 = smul.addr %s25, 2
          %s379 = sadd.s32 %s374, %s378
          %s380 = smul.addr %s379, 64
          %s381 = scalar_lea.hbm %s3, %s380
          %s382 = sshll.u32 %s370, 4
          %s383 = int_to_ptr.vmem [resolvable:$true] %s382
          %388 = dma.vmem_to_hbm [thread:$0]  %s383, 128, %s381, %s367, 64, 64, 4
        $region48: #{tpu_custom_call.1} parent=31 // pred_fallthru
          _
      $region32: #{tpu_custom_call.1} parent=5 // pred_fallthru
        _
      %p389 = scmp.le.s32.totalorder 2, %s16
      // Predicated region
      $region49: #{tpu_custom_call.1} parent=5 // pred_check
        %p390 = pneg %p389
      $region50: #{tpu_custom_call.1} parent=5 // pred_check_branch
        %392 = sbr.rel (%p390) target = $region52
      $region51: #{tpu_custom_call.1} parent=5 // pred_region
        %s393 = ssub.s32 %s16, 2
        // Predicated region
        $region53: #{tpu_custom_call.1} parent=51 // pred_check
          %p394 = pneg %p129
        $region54: #{tpu_custom_call.1} parent=51 // pred_check_branch
          %396 = sbr.rel (%p394) target = $region56
        $region55: #{tpu_custom_call.1} parent=51 // pred_region
          %s397 = sand.u32 %s114, 1
          %s398 = scalar_lea.sflag [#allocation4], %s397
          %s399 = sand.u32 %s114, 1
          %s400 = smul.addr %s399, 8
          %s401 = scalar_lea.vmem [#allocation8], %s400
          %402 = dma.done %s398, 128
        $region56: #{tpu_custom_call.1} parent=51 // pred_fallthru
          _
      $region52: #{tpu_custom_call.1} parent=5 // pred_fallthru
        _
    $region6: #{tpu_custom_call.1} parent=1 // loop_footer
      %s20 = sadd.s32 1, %s16
    $region7: #{tpu_custom_call.1} parent=1 // loop_footer_branch
      %15 = sbr.rel target = $region3
    $region8: #{tpu_custom_call.1} parent=1 // loop_exit
      _
    %403 = vsyncpa [#allocation3], 1
    %s404 = scalar_lea.sflag [#allocation3], 1
    %405 = vsyncpa %s404, 1
    %406 = vsyncpa [#allocation6], 1
    %407 = vsyncpa [#allocation4], 1
    %s408 = scalar_lea.sflag [#allocation4], 1
    %409 = vsyncpa %s408, 1

</llo_original>
